<compile_context>
chip_gen: v6e
topology: v6e:2x2x1
jax: 0.10.0
libtpu: 0.0.40
codegen_flags: <defaults>
</compile_context>

<pallas_src>
import jax
import jax.numpy as jnp
from jax.experimental import pallas as pl
from jax.experimental.pallas import tpu as pltpu  # noqa: F401  (TPU backend)

BN_EPS = 1e-5  # nn.BatchNorm1d default
LANE = 128


def _round_up(n, m=LANE):
    return ((n + m - 1) // m) * m


def _full_spec(shape):
    # grid=() -> single block covering the whole (small) array, resident in VMEM.
    return pl.BlockSpec(shape, lambda: (0,) * len(shape))


def _make_fused_kernel(num_layers):
    """Fused kernel: num_layers x [matmul -> batch-stats -> scale/shift -> relu]."""

    def kernel(x_ref, *refs):
        o_ref = refs[-1]
        p_refs = refs[:-1]  # (w_t, gamma, beta) per layer, lane-padded

        h = x_ref[...]  # (B, Cin_pad)
        for i in range(num_layers):
            w = p_refs[3 * i][...]        # (Cin_pad, Cout_pad)
            gamma = p_refs[3 * i + 1][...]  # (1, Cout_pad)
            beta = p_refs[3 * i + 2][...]   # (1, Cout_pad)

            # Linear (MXU matmul, f32 accumulation). Bias omitted: it cancels
            # exactly under training-mode BatchNorm.
            h = jnp.dot(h, w, preferred_element_type=jnp.float32)  # (B, Cout_pad)

            # BatchNorm1d (training): batch mean / biased batch variance.
            mean = jnp.mean(h, axis=0, keepdims=True)                   # (1, C)
            centered = h - mean
            var = jnp.mean(centered * centered, axis=0, keepdims=True)  # (1, C)
            inv_std = jax.lax.rsqrt(var + BN_EPS)

            # Fused per-channel scale & shift + ReLU (1 mul + 1 add per element).
            scale = gamma * inv_std                 # (1, C)
            shift = beta - mean * scale             # (1, C)
            h = jnp.maximum(h * scale + shift, 0.0)

        o_ref[...] = h.astype(o_ref.dtype)

    return kernel


def build_pointnet_decoder_forward(in_channel, mlp):
    """Returns a jitted forward(x, flat_packed_params) -> (B, mlp[-1])."""
    num_layers = len(mlp)
    cin_pad = _round_up(in_channel)
    cout_pads = [_round_up(c) for c in mlp]
    kernel = _make_fused_kernel(num_layers)

    def forward(x, flat_params):
        B = x.shape[0]
        if cin_pad != in_channel:
            x = jnp.pad(x, ((0, 0), (0, cin_pad - in_channel)))

        in_specs = [_full_spec((B, cin_pad))]
        last_pad = cin_pad
        for co_pad in cout_pads:
            in_specs += [
                _full_spec((last_pad, co_pad)),
                _full_spec((1, co_pad)),
                _full_spec((1, co_pad)),
            ]
            last_pad = co_pad

        out_pad = pl.pallas_call(
            kernel,
            out_shape=jax.ShapeDtypeStruct((B, cout_pads[-1]), jnp.float32),
            grid=(),
            in_specs=in_specs,
            out_specs=_full_spec((B, cout_pads[-1])),
        )(x, *flat_params)
        return out_pad[:, : mlp[-1]]

    return jax.jit(forward)


def init_pointnet_decoder_params(key, in_channel, mlp):
    """Params mimicking nn.Linear / nn.BatchNorm1d defaults (PyTorch layout)."""
    params = []
    last = in_channel
    for out_channel in mlp:
        key, kw, kb = jax.random.split(key, 3)
        bound = 1.0 / jnp.sqrt(jnp.float32(last))
        w = jax.random.uniform(kw, (out_channel, last), jnp.float32, -bound, bound)
        b = jax.random.uniform(kb, (out_channel,), jnp.float32, -bound, bound)
        params.append(
            dict(
                w=w,                                   # (out, in)
                b=b,                                   # (out,)  (cancels under BN)
                gamma=jnp.ones((out_channel,), jnp.float32),
                beta=jnp.zeros((out_channel,), jnp.float32),
            )
        )
        last = out_channel
    return params


def pack_params_for_kernel(params, in_channel, mlp):
    """Pre-transpose + lane-pad params; bias is intentionally dropped."""
    flat = []
    last = in_channel
    for p, out_channel in zip(params, mlp):
        ci_pad = _round_up(last)
        co_pad = _round_up(out_channel)
        w_t = p["w"].T  # (in, out)
        w_t_pad = jnp.zeros((ci_pad, co_pad), jnp.float32).at[:last, :out_channel].set(w_t)
        gamma_pad = jnp.zeros((1, co_pad), jnp.float32).at[0, :out_channel].set(p["gamma"])
        beta_pad = jnp.zeros((1, co_pad), jnp.float32).at[0, :out_channel].set(p["beta"])
        flat += [w_t_pad, gamma_pad, beta_pad]
        last = out_channel
    return flat


def _reference_forward(x, params):
    """Plain-JAX reference with the bias INCLUDED (matches PyTorch exactly)."""
    for p in params:
        h = x @ p["w"].T + p["b"]
        mean = jnp.mean(h, axis=0, keepdims=True)
        var = jnp.mean((h - mean) ** 2, axis=0, keepdims=True)
        y = p["gamma"] * (h - mean) * jax.lax.rsqrt(var + BN_EPS) + p["beta"]
        x = jnp.maximum(y, 0.0)
    return x


if __name__ == "__main__":
    key = jax.random.PRNGKey(0)
    key, kx, kp = jax.random.split(key, 3)

    # Small shapes consistent with the module: x is (batch, in_channel).
    batch = 8
    in_channel = 32
    mlp = (64, 32, 16)

    x = jax.random.normal(kx, (batch, in_channel), jnp.float32)
    params = init_pointnet_decoder_params(kp, in_channel, mlp)
    packed = pack_params_for_kernel(params, in_channel, mlp)

    forward = build_pointnet_decoder_forward(in_channel, mlp)
    out = forward(x, packed)
    out = jax.block_until_ready(out)

    ref = _reference_forward(x, params)
    assert out.shape == (batch, mlp[-1])
    assert jnp.allclose(out, ref, atol=1e-4, rtol=1e-4), float(jnp.max(jnp.abs(out - ref)))

    print("KERNEL_OK")
</pallas_src>

<mosaic_0001>
module attributes {stable_mosaic.version = 11 : i64} {
  func.func @kernel(%arg0: memref<8x128xf32, #tpu.memory_space<vmem>>, %arg1: memref<128x128xf32, #tpu.memory_space<vmem>>, %arg2: memref<1x128xf32, #tpu.memory_space<vmem>>, %arg3: memref<1x128xf32, #tpu.memory_space<vmem>>, %arg4: memref<128x128xf32, #tpu.memory_space<vmem>>, %arg5: memref<1x128xf32, #tpu.memory_space<vmem>>, %arg6: memref<1x128xf32, #tpu.memory_space<vmem>>, %arg7: memref<128x128xf32, #tpu.memory_space<vmem>>, %arg8: memref<1x128xf32, #tpu.memory_space<vmem>>, %arg9: memref<1x128xf32, #tpu.memory_space<vmem>>, %arg10: memref<8x128xf32, #tpu.memory_space<vmem>>) attributes {dimension_semantics = [], scalar_prefetch = 0 : i64, scratch_operands = 0 : i64, tpu.core_type = #tpu.core_type<tc>} {
    %c0 = arith.constant 0 : index
    %c0_0 = arith.constant 0 : index
    %0 = vector.load %arg0[%c0, %c0_0] : memref<8x128xf32, #tpu.memory_space<vmem>>, vector<8x128xf32>
    %c0_1 = arith.constant 0 : index
    %c0_2 = arith.constant 0 : index
    %1 = vector.load %arg1[%c0_1, %c0_2] : memref<128x128xf32, #tpu.memory_space<vmem>>, vector<128x128xf32>
    %c0_3 = arith.constant 0 : index
    %c0_4 = arith.constant 0 : index
    %2 = vector.load %arg2[%c0_3, %c0_4] : memref<1x128xf32, #tpu.memory_space<vmem>>, vector<1x128xf32>
    %c0_5 = arith.constant 0 : index
    %c0_6 = arith.constant 0 : index
    %3 = vector.load %arg3[%c0_5, %c0_6] : memref<1x128xf32, #tpu.memory_space<vmem>>, vector<1x128xf32>
    %cst = arith.constant dense<0.000000e+00> : vector<8x128xf32>
    %4 = tpu.matmul %0, %1, %cst {dimension_numbers = #tpu.dot_dimension_numbers<[1], [0], [0], [1], [0, 0, 1, 1], [], []>} : vector<8x128xf32>, vector<128x128xf32>, vector<8x128xf32> -> vector<8x128xf32>
    %cst_7 = arith.constant dense<0.000000e+00> : vector<128xf32>
    %5 = vector.multi_reduction <add>, %4, %cst_7 [0] : vector<8x128xf32> to vector<128xf32>
    %6 = vector.shape_cast %5 : vector<128xf32> to vector<1x128xf32>
    %cst_8 = arith.constant 8.000000e+00 : f32
    %7 = vector.broadcast %cst_8 : f32 to vector<1x128xf32>
    %8 = arith.divf %6, %7 : vector<1x128xf32>
    %9 = vector.broadcast %8 : vector<1x128xf32> to vector<8x128xf32>
    %10 = arith.subf %4, %9 : vector<8x128xf32>
    %11 = arith.mulf %10, %10 : vector<8x128xf32>
    %cst_9 = arith.constant dense<0.000000e+00> : vector<128xf32>
    %12 = vector.multi_reduction <add>, %11, %cst_9 [0] : vector<8x128xf32> to vector<128xf32>
    %13 = vector.shape_cast %12 : vector<128xf32> to vector<1x128xf32>
    %cst_10 = arith.constant 8.000000e+00 : f32
    %14 = vector.broadcast %cst_10 : f32 to vector<1x128xf32>
    %15 = arith.divf %13, %14 : vector<1x128xf32>
    %cst_11 = arith.constant 9.99999974E-6 : f32
    %16 = vector.broadcast %cst_11 : f32 to vector<1x128xf32>
    %17 = arith.addf %15, %16 : vector<1x128xf32>
    %18 = math.rsqrt %17 : vector<1x128xf32>
    %19 = arith.mulf %2, %18 : vector<1x128xf32>
    %20 = arith.mulf %8, %19 : vector<1x128xf32>
    %21 = arith.subf %3, %20 : vector<1x128xf32>
    %22 = vector.broadcast %19 : vector<1x128xf32> to vector<8x128xf32>
    %23 = arith.mulf %4, %22 : vector<8x128xf32>
    %24 = vector.broadcast %21 : vector<1x128xf32> to vector<8x128xf32>
    %25 = arith.addf %23, %24 : vector<8x128xf32>
    %cst_12 = arith.constant 0.000000e+00 : f32
    %26 = vector.broadcast %cst_12 : f32 to vector<8x128xf32>
    %27 = arith.maximumf %25, %26 : vector<8x128xf32>
    %c0_13 = arith.constant 0 : index
    %c0_14 = arith.constant 0 : index
    %28 = vector.load %arg4[%c0_13, %c0_14] : memref<128x128xf32, #tpu.memory_space<vmem>>, vector<128x128xf32>
    %c0_15 = arith.constant 0 : index
    %c0_16 = arith.constant 0 : index
    %29 = vector.load %arg5[%c0_15, %c0_16] : memref<1x128xf32, #tpu.memory_space<vmem>>, vector<1x128xf32>
    %c0_17 = arith.constant 0 : index
    %c0_18 = arith.constant 0 : index
    %30 = vector.load %arg6[%c0_17, %c0_18] : memref<1x128xf32, #tpu.memory_space<vmem>>, vector<1x128xf32>
    %cst_19 = arith.constant dense<0.000000e+00> : vector<8x128xf32>
    %31 = tpu.matmul %27, %28, %cst_19 {dimension_numbers = #tpu.dot_dimension_numbers<[1], [0], [0], [1], [0, 0, 1, 1], [], []>} : vector<8x128xf32>, vector<128x128xf32>, vector<8x128xf32> -> vector<8x128xf32>
    %cst_20 = arith.constant dense<0.000000e+00> : vector<128xf32>
    %32 = vector.multi_reduction <add>, %31, %cst_20 [0] : vector<8x128xf32> to vector<128xf32>
    %33 = vector.shape_cast %32 : vector<128xf32> to vector<1x128xf32>
    %cst_21 = arith.constant 8.000000e+00 : f32
    %34 = vector.broadcast %cst_21 : f32 to vector<1x128xf32>
    %35 = arith.divf %33, %34 : vector<1x128xf32>
    %36 = vector.broadcast %35 : vector<1x128xf32> to vector<8x128xf32>
    %37 = arith.subf %31, %36 : vector<8x128xf32>
    %38 = arith.mulf %37, %37 : vector<8x128xf32>
    %cst_22 = arith.constant dense<0.000000e+00> : vector<128xf32>
    %39 = vector.multi_reduction <add>, %38, %cst_22 [0] : vector<8x128xf32> to vector<128xf32>
    %40 = vector.shape_cast %39 : vector<128xf32> to vector<1x128xf32>
    %cst_23 = arith.constant 8.000000e+00 : f32
    %41 = vector.broadcast %cst_23 : f32 to vector<1x128xf32>
    %42 = arith.divf %40, %41 : vector<1x128xf32>
    %cst_24 = arith.constant 9.99999974E-6 : f32
    %43 = vector.broadcast %cst_24 : f32 to vector<1x128xf32>
    %44 = arith.addf %42, %43 : vector<1x128xf32>
    %45 = math.rsqrt %44 : vector<1x128xf32>
    %46 = arith.mulf %29, %45 : vector<1x128xf32>
    %47 = arith.mulf %35, %46 : vector<1x128xf32>
    %48 = arith.subf %30, %47 : vector<1x128xf32>
    %49 = vector.broadcast %46 : vector<1x128xf32> to vector<8x128xf32>
    %50 = arith.mulf %31, %49 : vector<8x128xf32>
    %51 = vector.broadcast %48 : vector<1x128xf32> to vector<8x128xf32>
    %52 = arith.addf %50, %51 : vector<8x128xf32>
    %cst_25 = arith.constant 0.000000e+00 : f32
    %53 = vector.broadcast %cst_25 : f32 to vector<8x128xf32>
    %54 = arith.maximumf %52, %53 : vector<8x128xf32>
    %c0_26 = arith.constant 0 : index
    %c0_27 = arith.constant 0 : index
    %55 = vector.load %arg7[%c0_26, %c0_27] : memref<128x128xf32, #tpu.memory_space<vmem>>, vector<128x128xf32>
    %c0_28 = arith.constant 0 : index
    %c0_29 = arith.constant 0 : index
    %56 = vector.load %arg8[%c0_28, %c0_29] : memref<1x128xf32, #tpu.memory_space<vmem>>, vector<1x128xf32>
    %c0_30 = arith.constant 0 : index
    %c0_31 = arith.constant 0 : index
    %57 = vector.load %arg9[%c0_30, %c0_31] : memref<1x128xf32, #tpu.memory_space<vmem>>, vector<1x128xf32>
    %cst_32 = arith.constant dense<0.000000e+00> : vector<8x128xf32>
    %58 = tpu.matmul %54, %55, %cst_32 {dimension_numbers = #tpu.dot_dimension_numbers<[1], [0], [0], [1], [0, 0, 1, 1], [], []>} : vector<8x128xf32>, vector<128x128xf32>, vector<8x128xf32> -> vector<8x128xf32>
    %cst_33 = arith.constant dense<0.000000e+00> : vector<128xf32>
    %59 = vector.multi_reduction <add>, %58, %cst_33 [0] : vector<8x128xf32> to vector<128xf32>
    %60 = vector.shape_cast %59 : vector<128xf32> to vector<1x128xf32>
    %cst_34 = arith.constant 8.000000e+00 : f32
    %61 = vector.broadcast %cst_34 : f32 to vector<1x128xf32>
    %62 = arith.divf %60, %61 : vector<1x128xf32>
    %63 = vector.broadcast %62 : vector<1x128xf32> to vector<8x128xf32>
    %64 = arith.subf %58, %63 : vector<8x128xf32>
    %65 = arith.mulf %64, %64 : vector<8x128xf32>
    %cst_35 = arith.constant dense<0.000000e+00> : vector<128xf32>
    %66 = vector.multi_reduction <add>, %65, %cst_35 [0] : vector<8x128xf32> to vector<128xf32>
    %67 = vector.shape_cast %66 : vector<128xf32> to vector<1x128xf32>
    %cst_36 = arith.constant 8.000000e+00 : f32
    %68 = vector.broadcast %cst_36 : f32 to vector<1x128xf32>
    %69 = arith.divf %67, %68 : vector<1x128xf32>
    %cst_37 = arith.constant 9.99999974E-6 : f32
    %70 = vector.broadcast %cst_37 : f32 to vector<1x128xf32>
    %71 = arith.addf %69, %70 : vector<1x128xf32>
    %72 = math.rsqrt %71 : vector<1x128xf32>
    %73 = arith.mulf %56, %72 : vector<1x128xf32>
    %74 = arith.mulf %62, %73 : vector<1x128xf32>
    %75 = arith.subf %57, %74 : vector<1x128xf32>
    %76 = vector.broadcast %73 : vector<1x128xf32> to vector<8x128xf32>
    %77 = arith.mulf %58, %76 : vector<8x128xf32>
    %78 = vector.broadcast %75 : vector<1x128xf32> to vector<8x128xf32>
    %79 = arith.addf %77, %78 : vector<8x128xf32>
    %cst_38 = arith.constant 0.000000e+00 : f32
    %80 = vector.broadcast %cst_38 : f32 to vector<8x128xf32>
    %81 = arith.maximumf %79, %80 : vector<8x128xf32>
    %c0_39 = arith.constant 0 : index
    %c0_40 = arith.constant 0 : index
    %82 = vector.load %arg10[%c0_39, %c0_40] : memref<8x128xf32, #tpu.memory_space<vmem>>, vector<8x128xf32>
    tpu.vector_store %arg10[%c0_39, %c0_40], %81 {strides = array<i32>} : memref<8x128xf32, #tpu.memory_space<vmem>>, vector<8x128xf32>,
    return
  }
}

</mosaic_0001>

<llo_original>
// kernel: forward.1
$region0: #{forward.1}
  #allocation0 [shape = 'u32[]', space=smem, size = 0x4, offset = 0x4, fixed_abs, tag = 'smem constant byte address 0x4 - core index']
  #allocation1 [shape = 'u32[144,128]{1,0:T(1,128)}', space=vmem, size = 0x12000, scoped, tag = 'internal scratch']
  %s0 = inlined_call_operand.vmem [shape: f32[8,128], index: 0, kind: input, shape index: {}]
  %s1 = inlined_call_operand.hbm [shape: f32[128,128], index: 1, kind: input, shape index: {}]
  %s2 = inlined_call_operand.vmem [shape: f32[1,128], index: 2, kind: input, shape index: {}]
  %s3 = inlined_call_operand.vmem [shape: f32[1,128], index: 3, kind: input, shape index: {}]
  %s4 = inlined_call_operand.hbm [shape: f32[128,128], index: 4, kind: input, shape index: {}]
  %s5 = inlined_call_operand.vmem [shape: f32[1,128], index: 5, kind: input, shape index: {}]
  %s6 = inlined_call_operand.vmem [shape: f32[1,128], index: 6, kind: input, shape index: {}]
  %s7 = inlined_call_operand.hbm [shape: f32[128,128], index: 7, kind: input, shape index: {}]
  %s8 = inlined_call_operand.vmem [shape: f32[1,128], index: 8, kind: input, shape index: {}]
  %s9 = inlined_call_operand.vmem [shape: f32[1,128], index: 9, kind: input, shape index: {}]
  %s10 = inlined_call_operand.hbm [shape: f32[8,128], index: 10, kind: output, shape index: {}]
  %s11 = sld [smem:[#allocation0]]
  $region62: #{forward.1} parent=0
    _
  %s13 = ssub.s32 1, %s11
  %s14 = scalar_select 0, %s13, %s11
  $region1: #{forward.1} parent=0
    #allocation2 [shape = 'u8[65536]{0}', space=vmem, size = 0x10000, scoped, tag = 'input window, operand 1, single buffered']
    #allocation3 [shape = 's32[1]{0}', space=sflag, size = 0x4, scoped, tag = 'scoped memory for forward.1']
    #allocation4 [shape = 's32[1]{0}', space=sflag, size = 0x4, scoped, tag = 'scoped memory for forward.1']
    #allocation5 [shape = 'u8[65536]{0}', space=vmem, size = 0x10000, scoped, tag = 'input window, operand 4, single buffered']
    #allocation6 [shape = 's32[1]{0}', space=sflag, size = 0x4, scoped, tag = 'scoped memory for forward.1']
    #allocation7 [shape = 'u8[65536]{0}', space=vmem, size = 0x10000, scoped, tag = 'input window, operand 7, single buffered']
    #allocation8 [shape = 'u8[4096]{0}', space=vmem, size = 0x1000, scoped, tag = 'output window, operand 0, single buffered']
    %15 = vsyncpa [#allocation3], 0
    %16 = vsyncpa [#allocation6], 0
    %17 = vsyncpa [#allocation4], 0
    // Predicated region
    $region2: #{forward.1} parent=1 // pred_check
      _
    $region3: #{forward.1} parent=1 // pred_check_branch
      %19 = sbr.rel (0) target = $region5
    $region4: #{forward.1} parent=1 // pred_region
      _
    $region5: #{forward.1} parent=1 // pred_fallthru
      _
    // Predicated region
    $region6: #{forward.1} parent=1 // pred_check
      _
    $region7: #{forward.1} parent=1 // pred_check_branch
      %21 = sbr.rel (0) target = $region9
    $region8: #{forward.1} parent=1 // pred_region
      %s23 = ssub.s32 2048, 2048
      %24 = vsyncadd [#allocation3], %s23
      %s25 = sshll.u32 [#allocation2], 4
      %s26 = int_to_ptr.vmem [resolvable:$true] %s25
      %31 = dma.hbm_to_vmem [thread:$0]  %s1, 2048, %s26, [#allocation3], 128, 128, 8
    $region9: #{forward.1} parent=1 // pred_fallthru
      _
    // Predicated region
    $region10: #{forward.1} parent=1 // pred_check
      _
    $region11: #{forward.1} parent=1 // pred_check_branch
      %33 = sbr.rel (0) target = $region13
    $region12: #{forward.1} parent=1 // pred_region
      _
    $region13: #{forward.1} parent=1 // pred_fallthru
      _
    // Predicated region
    $region14: #{forward.1} parent=1 // pred_check
      _
    $region15: #{forward.1} parent=1 // pred_check_branch
      %35 = sbr.rel (0) target = $region17
    $region16: #{forward.1} parent=1 // pred_region
      _
    $region17: #{forward.1} parent=1 // pred_fallthru
      _
    // Predicated region
    $region18: #{forward.1} parent=1 // pred_check
      _
    $region19: #{forward.1} parent=1 // pred_check_branch
      %37 = sbr.rel (0) target = $region21
    $region20: #{forward.1} parent=1 // pred_region
      %s39 = ssub.s32 2048, 2048
      %40 = vsyncadd [#allocation6], %s39
      %s41 = sshll.u32 [#allocation5], 4
      %s42 = int_to_ptr.vmem [resolvable:$true] %s41
      %47 = dma.hbm_to_vmem [thread:$0]  %s4, 2048, %s42, [#allocation6], 128, 128, 8
    $region21: #{forward.1} parent=1 // pred_fallthru
      _
    // Predicated region
    $region22: #{forward.1} parent=1 // pred_check
      _
    $region23: #{forward.1} parent=1 // pred_check_branch
      %49 = sbr.rel (0) target = $region25
    $region24: #{forward.1} parent=1 // pred_region
      _
    $region25: #{forward.1} parent=1 // pred_fallthru
      _
    // Predicated region
    $region26: #{forward.1} parent=1 // pred_check
      _
    $region27: #{forward.1} parent=1 // pred_check_branch
      %51 = sbr.rel (0) target = $region29
    $region28: #{forward.1} parent=1 // pred_region
      _
    $region29: #{forward.1} parent=1 // pred_fallthru
      _
    // Predicated region
    $region30: #{forward.1} parent=1 // pred_check
      _
    $region31: #{forward.1} parent=1 // pred_check_branch
      %53 = sbr.rel (0) target = $region33
    $region32: #{forward.1} parent=1 // pred_region
      %s55 = ssub.s32 2048, 2048
      %56 = vsyncadd [#allocation6], %s55
      %s57 = sshll.u32 [#allocation7], 4
      %s58 = int_to_ptr.vmem [resolvable:$true] %s57
      %63 = dma.hbm_to_vmem [thread:$0]  %s7, 2048, %s58, [#allocation6], 128, 128, 8
    $region33: #{forward.1} parent=1 // pred_fallthru
      _
    // Predicated region
    $region34: #{forward.1} parent=1 // pred_check
      _
    $region35: #{forward.1} parent=1 // pred_check_branch
      %65 = sbr.rel (0) target = $region37
    $region36: #{forward.1} parent=1 // pred_region
      _
    $region37: #{forward.1} parent=1 // pred_fallthru
      _
    // Predicated region
    $region38: #{forward.1} parent=1 // pred_check
      _
    $region39: #{forward.1} parent=1 // pred_check_branch
      %67 = sbr.rel (0) target = $region41
    $region40: #{forward.1} parent=1 // pred_region
      _
    $region41: #{forward.1} parent=1 // pred_fallthru
      _
    // Predicated region
    $region42: #{forward.1} parent=1 // pred_check
      _
    $region43: #{forward.1} parent=1 // pred_check_branch
      %69 = sbr.rel (0) target = $region45
    $region44: #{forward.1} parent=1 // pred_region
      %70 = dma.done [#allocation3], 2048
    $region45: #{forward.1} parent=1 // pred_fallthru
      _
    // Predicated region
    $region46: #{forward.1} parent=1 // pred_check
      _
    $region47: #{forward.1} parent=1 // pred_check_branch
      %72 = sbr.rel (0) target = $region49
    $region48: #{forward.1} parent=1 // pred_region
      %73 = dma.done [#allocation6], 2048
    $region49: #{forward.1} parent=1 // pred_fallthru
      _
    // Predicated region
    $region50: #{forward.1} parent=1 // pred_check
      _
    $region51: #{forward.1} parent=1 // pred_check_branch
      %75 = sbr.rel (0) target = $region53
    $region52: #{forward.1} parent=1 // pred_region
      %76 = dma.done [#allocation6], 2048
    $region53: #{forward.1} parent=1 // pred_fallthru
      _
    %v77 = vld [vmem:[%s0] sm:$0xff]
    %v78 = vld [vmem:[#allocation2] sm:$0xff]
    %v79 = vld [vmem:[#allocation2 + $0x8] sm:$0xff]
    %v80 = vld [vmem:[#allocation2 + $0x10] sm:$0xff]
    %v81 = vld [vmem:[#allocation2 + $0x18] sm:$0xff]
    %v82 = vld [vmem:[#allocation2 + $0x20] sm:$0xff]
    %v83 = vld [vmem:[#allocation2 + $0x28] sm:$0xff]
    %v84 = vld [vmem:[#allocation2 + $0x30] sm:$0xff]
    %v85 = vld [vmem:[#allocation2 + $0x38] sm:$0xff]
    %v86 = vld [vmem:[#allocation2 + $0x40] sm:$0xff]
    %v87 = vld [vmem:[#allocation2 + $0x48] sm:$0xff]
    %v88 = vld [vmem:[#allocation2 + $0x50] sm:$0xff]
    %v89 = vld [vmem:[#allocation2 + $0x58] sm:$0xff]
    %v90 = vld [vmem:[#allocation2 + $0x60] sm:$0xff]
    %v91 = vld [vmem:[#allocation2 + $0x68] sm:$0xff]
    %v92 = vld [vmem:[#allocation2 + $0x70] sm:$0xff]
    %v93 = vld [vmem:[#allocation2 + $0x78] sm:$0xff]
    %v94 = vld [vmem:[%s2] sm:$0x1]
    %v95 = vld [vmem:[%s3] sm:$0x1]
    %96 = vmatprep.subr.mxu0 0.0
    %97 = vmatpush1.msra.mxu0 %v93
    %98 = vmatprep.subr.mxu0 0.0
    %99 = vmatpush1.msra.mxu0 %v92
    %100 = vmatprep.subr.mxu0 0.0
    %101 = vmatpush1.msra.mxu0 %v91
    %102 = vmatprep.subr.mxu0 0.0
    %103 = vmatpush1.msra.mxu0 %v90
    %104 = vmatprep.subr.mxu0 0.0
    %105 = vmatpush1.msra.mxu0 %v89
    %106 = vmatprep.subr.mxu0 0.0
    %107 = vmatpush1.msra.mxu0 %v88
    %108 = vmatprep.subr.mxu0 0.0
    %109 = vmatpush1.msra.mxu0 %v87
    %110 = vmatprep.subr.mxu0 0.0
    %111 = vmatpush1.msra.mxu0 %v86
    %112 = vmatprep.subr.mxu0 0.0
    %113 = vmatpush1.msra.mxu0 %v85
    %114 = vmatprep.subr.mxu0 0.0
    %115 = vmatpush1.msra.mxu0 %v84
    %116 = vmatprep.subr.mxu0 0.0
    %117 = vmatpush1.msra.mxu0 %v83
    %118 = vmatprep.subr.mxu0 0.0
    %119 = vmatpush1.msra.mxu0 %v82
    %120 = vmatprep.subr.mxu0 0.0
    %121 = vmatpush1.msra.mxu0 %v81
    %122 = vmatprep.subr.mxu0 0.0
    %123 = vmatpush1.msra.mxu0 %v80
    %124 = vmatprep.subr.mxu0 0.0
    %125 = vmatpush1.msra.mxu0 %v79
    %126 = vmatprep.subr.mxu0 0.0
    %127 = vmatpush1.msra.mxu0 %v78
    %128 = vmatprep.subr.mxu0 0.0
    %129 = vmatpush2.msra.mxu0 0.0
    %130 = vmatprep.subr.mxu0 0.0
    %131 = vmatpush2.msra.mxu0 0.0
    %132 = vmatprep.subr.mxu0 0.0
    %133 = vmatpush2.msra.mxu0 0.0
    %134 = vmatprep.subr.mxu0 0.0
    %135 = vmatpush2.msra.mxu0 0.0
    %136 = vmatprep.subr.mxu0 0.0
    %137 = vmatpush2.msra.mxu0 0.0
    %138 = vmatprep.subr.mxu0 0.0
    %139 = vmatpush2.msra.mxu0 0.0
    %140 = vmatprep.subr.mxu0 0.0
    %141 = vmatpush2.msra.mxu0 0.0
    %142 = vmatprep.subr.mxu0 0.0
    %143 = vmatpush2.msra.mxu0 0.0
    %144 = vmatprep.subr.mxu0 0.0
    %145 = vmatpush2.msra.mxu0 0.0
    %146 = vmatprep.subr.mxu0 0.0
    %147 = vmatpush2.msra.mxu0 0.0
    %148 = vmatprep.subr.mxu0 0.0
    %149 = vmatpush2.msra.mxu0 0.0
    %150 = vmatprep.subr.mxu0 0.0
    %151 = vmatpush2.msra.mxu0 0.0
    %152 = vmatprep.subr.mxu0 0.0
    %153 = vmatpush2.msra.mxu0 0.0
    %154 = vmatprep.subr.mxu0 0.0
    %155 = vmatpush2.msra.mxu0 0.0
    %156 = vmatprep.subr.mxu0 0.0
    %157 = vmatpush2.msra.mxu0 0.0
    %158 = vmatprep.subr.mxu0 0.0
    %159 = vmatpush2.msra.mxu0 0.0
    %160 = vmatprep.mubr.f32.mxu0 0.0
    %161 = vmatmul.mubr.f32.gmra.mxu0 %v77
    %v162 = vpop.f32.mrf.mxu0
    %v163 = vadd.f32 0.0, %v162
    %v164 = vpop.f32.mrf.mxu0
    %165 = vdwg.mxu0
    %v166 = vrot.slane %v163, 4
    %v167 = vadd.f32 %v163, %v166
    %v168 = vrot.slane %v167, 2
    %v169 = vadd.f32 %v167, %v168
    %v170 = vrot.slane %v169, 1
    %v171 = vadd.f32 %v169, %v170
    %v172 = vrcp.pop 8.0
    %v173 = vmul.f32 %v171, %v172
    %v174 = vsub.f32 %v163, %v173
    %v175 = vmul.f32 %v174, %v174
    %v176 = vrot.slane %v175, 4
    %v177 = vadd.f32 %v175, %v176
    %v178 = vrot.slane %v177, 2
    %v179 = vadd.f32 %v177, %v178
    %v180 = vrot.slane %v179, 1
    %v181 = vadd.f32 %v179, %v180
    %v182 = vmul.f32 %v181, %v172
    %v183 = vadd.f32 %v182, 1e-05
    %v184 = vrsqrt.pop %v183
    %v185 = vmul.f32 %v94, %v184
    %v186 = vmul.f32 %v173, %v185
    %v187 = vsub.f32 %v95, %v186
    %v189 = vlaneseq
    %v190 = vshrl.u32 %v189, 7
    %v191 = vsub.s32 0, %v190
    %v192 = vrot.slane %v185, %v191
    %v194 = vmul.f32 %v163, %v192
    %v196 = vlaneseq
    %v197 = vshrl.u32 %v196, 7
    %v198 = vsub.s32 0, %v197
    %v199 = vrot.slane %v187, %v198
    %v201 = vadd.f32 %v194, %v199
    %v202 = vmax.f32 %v201, 0.0
    %v203 = vld [vmem:[#allocation5] sm:$0xff]
    %v204 = vld [vmem:[#allocation5 + $0x8] sm:$0xff]
    %v205 = vld [vmem:[#allocation5 + $0x10] sm:$0xff]
    %v206 = vld [vmem:[#allocation5 + $0x18] sm:$0xff]
    %v207 = vld [vmem:[#allocation5 + $0x20] sm:$0xff]
    %v208 = vld [vmem:[#allocation5 + $0x28] sm:$0xff]
    %v209 = vld [vmem:[#allocation5 + $0x30] sm:$0xff]
    %v210 = vld [vmem:[#allocation5 + $0x38] sm:$0xff]
    %v211 = vld [vmem:[#allocation5 + $0x40] sm:$0xff]
    %v212 = vld [vmem:[#allocation5 + $0x48] sm:$0xff]
    %v213 = vld [vmem:[#allocation5 + $0x50] sm:$0xff]
    %v214 = vld [vmem:[#allocation5 + $0x58] sm:$0xff]
    %v215 = vld [vmem:[#allocation5 + $0x60] sm:$0xff]
    %v216 = vld [vmem:[#allocation5 + $0x68] sm:$0xff]
    %v217 = vld [vmem:[#allocation5 + $0x70] sm:$0xff]
    %v218 = vld [vmem:[#allocation5 + $0x78] sm:$0xff]
    %v219 = vld [vmem:[%s5] sm:$0x1]
    %v220 = vld [vmem:[%s6] sm:$0x1]
    %221 = vmatprep.subr.mxu0 0.0
    %222 = vmatpush1.msra.mxu0 %v218
    %223 = vmatprep.subr.mxu0 0.0
    %224 = vmatpush1.msra.mxu0 %v217
    %225 = vmatprep.subr.mxu0 0.0
    %226 = vmatpush1.msra.mxu0 %v216
    %227 = vmatprep.subr.mxu0 0.0
    %228 = vmatpush1.msra.mxu0 %v215
    %229 = vmatprep.subr.mxu0 0.0
    %230 = vmatpush1.msra.mxu0 %v214
    %231 = vmatprep.subr.mxu0 0.0
    %232 = vmatpush1.msra.mxu0 %v213
    %233 = vmatprep.subr.mxu0 0.0
    %234 = vmatpush1.msra.mxu0 %v212
    %235 = vmatprep.subr.mxu0 0.0
    %236 = vmatpush1.msra.mxu0 %v211
    %237 = vmatprep.subr.mxu0 0.0
    %238 = vmatpush1.msra.mxu0 %v210
    %239 = vmatprep.subr.mxu0 0.0
    %240 = vmatpush1.msra.mxu0 %v209
    %241 = vmatprep.subr.mxu0 0.0
    %242 = vmatpush1.msra.mxu0 %v208
    %243 = vmatprep.subr.mxu0 0.0
    %244 = vmatpush1.msra.mxu0 %v207
    %245 = vmatprep.subr.mxu0 0.0
    %246 = vmatpush1.msra.mxu0 %v206
    %247 = vmatprep.subr.mxu0 0.0
    %248 = vmatpush1.msra.mxu0 %v205
    %249 = vmatprep.subr.mxu0 0.0
    %250 = vmatpush1.msra.mxu0 %v204
    %251 = vmatprep.subr.mxu0 0.0
    %252 = vmatpush1.msra.mxu0 %v203
    %253 = vmatprep.subr.mxu0 0.0
    %254 = vmatpush2.msra.mxu0 0.0
    %255 = vmatprep.subr.mxu0 0.0
    %256 = vmatpush2.msra.mxu0 0.0
    %257 = vmatprep.subr.mxu0 0.0
    %258 = vmatpush2.msra.mxu0 0.0
    %259 = vmatprep.subr.mxu0 0.0
    %260 = vmatpush2.msra.mxu0 0.0
    %261 = vmatprep.subr.mxu0 0.0
    %262 = vmatpush2.msra.mxu0 0.0
    %263 = vmatprep.subr.mxu0 0.0
    %264 = vmatpush2.msra.mxu0 0.0
    %265 = vmatprep.subr.mxu0 0.0
    %266 = vmatpush2.msra.mxu0 0.0
    %267 = vmatprep.subr.mxu0 0.0
    %268 = vmatpush2.msra.mxu0 0.0
    %269 = vmatprep.subr.mxu0 0.0
    %270 = vmatpush2.msra.mxu0 0.0
    %271 = vmatprep.subr.mxu0 0.0
    %272 = vmatpush2.msra.mxu0 0.0
    %273 = vmatprep.subr.mxu0 0.0
    %274 = vmatpush2.msra.mxu0 0.0
    %275 = vmatprep.subr.mxu0 0.0
    %276 = vmatpush2.msra.mxu0 0.0
    %277 = vmatprep.subr.mxu0 0.0
    %278 = vmatpush2.msra.mxu0 0.0
    %279 = vmatprep.subr.mxu0 0.0
    %280 = vmatpush2.msra.mxu0 0.0
    %281 = vmatprep.subr.mxu0 0.0
    %282 = vmatpush2.msra.mxu0 0.0
    %283 = vmatprep.subr.mxu0 0.0
    %284 = vmatpush2.msra.mxu0 0.0
    %285 = vmatprep.mubr.f32.mxu0 0.0
    %286 = vmatmul.mubr.f32.gmra.mxu0 %v202
    %v287 = vpop.f32.mrf.mxu0
    %v288 = vadd.f32 0.0, %v287
    %v289 = vpop.f32.mrf.mxu0
    %290 = vdwg.mxu0
    %v291 = vrot.slane %v288, 4
    %v292 = vadd.f32 %v288, %v291
    %v293 = vrot.slane %v292, 2
    %v294 = vadd.f32 %v292, %v293
    %v295 = vrot.slane %v294, 1
    %v296 = vadd.f32 %v294, %v295
    %v297 = vmul.f32 %v296, %v172
    %v298 = vsub.f32 %v288, %v297
    %v299 = vmul.f32 %v298, %v298
    %v300 = vrot.slane %v299, 4
    %v301 = vadd.f32 %v299, %v300
    %v302 = vrot.slane %v301, 2
    %v303 = vadd.f32 %v301, %v302
    %v304 = vrot.slane %v303, 1
    %v305 = vadd.f32 %v303, %v304
    %v306 = vmul.f32 %v305, %v172
    %v307 = vadd.f32 %v306, 1e-05
    %v308 = vrsqrt.pop %v307
    %v309 = vmul.f32 %v219, %v308
    %v310 = vmul.f32 %v297, %v309
    %v311 = vsub.f32 %v220, %v310
    %v313 = vlaneseq
    %v314 = vshrl.u32 %v313, 7
    %v315 = vsub.s32 0, %v314
    %v316 = vrot.slane %v309, %v315
    %v318 = vmul.f32 %v288, %v316
    %v320 = vlaneseq
    %v321 = vshrl.u32 %v320, 7
    %v322 = vsub.s32 0, %v321
    %v323 = vrot.slane %v311, %v322
    %v325 = vadd.f32 %v318, %v323
    %v326 = vmax.f32 %v325, 0.0
    %v327 = vld [vmem:[#allocation7] sm:$0xff]
    %v328 = vld [vmem:[#allocation7 + $0x8] sm:$0xff]
    %v329 = vld [vmem:[#allocation7 + $0x10] sm:$0xff]
    %v330 = vld [vmem:[#allocation7 + $0x18] sm:$0xff]
    %v331 = vld [vmem:[#allocation7 + $0x20] sm:$0xff]
    %v332 = vld [vmem:[#allocation7 + $0x28] sm:$0xff]
    %v333 = vld [vmem:[#allocation7 + $0x30] sm:$0xff]
    %v334 = vld [vmem:[#allocation7 + $0x38] sm:$0xff]
    %v335 = vld [vmem:[#allocation7 + $0x40] sm:$0xff]
    %v336 = vld [vmem:[#allocation7 + $0x48] sm:$0xff]
    %v337 = vld [vmem:[#allocation7 + $0x50] sm:$0xff]
    %v338 = vld [vmem:[#allocation7 + $0x58] sm:$0xff]
    %v339 = vld [vmem:[#allocation7 + $0x60] sm:$0xff]
    %v340 = vld [vmem:[#allocation7 + $0x68] sm:$0xff]
    %v341 = vld [vmem:[#allocation7 + $0x70] sm:$0xff]
    %v342 = vld [vmem:[#allocation7 + $0x78] sm:$0xff]
    %v343 = vld [vmem:[%s8] sm:$0x1]
    %v344 = vld [vmem:[%s9] sm:$0x1]
    %345 = vmatprep.subr.mxu0 0.0
    %346 = vmatpush1.msra.mxu0 %v342
    %347 = vmatprep.subr.mxu0 0.0
    %348 = vmatpush1.msra.mxu0 %v341
    %349 = vmatprep.subr.mxu0 0.0
    %350 = vmatpush1.msra.mxu0 %v340
    %351 = vmatprep.subr.mxu0 0.0
    %352 = vmatpush1.msra.mxu0 %v339
    %353 = vmatprep.subr.mxu0 0.0
    %354 = vmatpush1.msra.mxu0 %v338
    %355 = vmatprep.subr.mxu0 0.0
    %356 = vmatpush1.msra.mxu0 %v337
    %357 = vmatprep.subr.mxu0 0.0
    %358 = vmatpush1.msra.mxu0 %v336
    %359 = vmatprep.subr.mxu0 0.0
    %360 = vmatpush1.msra.mxu0 %v335
    %361 = vmatprep.subr.mxu0 0.0
    %362 = vmatpush1.msra.mxu0 %v334
    %363 = vmatprep.subr.mxu0 0.0
    %364 = vmatpush1.msra.mxu0 %v333
    %365 = vmatprep.subr.mxu0 0.0
    %366 = vmatpush1.msra.mxu0 %v332
    %367 = vmatprep.subr.mxu0 0.0
    %368 = vmatpush1.msra.mxu0 %v331
    %369 = vmatprep.subr.mxu0 0.0
    %370 = vmatpush1.msra.mxu0 %v330
    %371 = vmatprep.subr.mxu0 0.0
    %372 = vmatpush1.msra.mxu0 %v329
    %373 = vmatprep.subr.mxu0 0.0
    %374 = vmatpush1.msra.mxu0 %v328
    %375 = vmatprep.subr.mxu0 0.0
    %376 = vmatpush1.msra.mxu0 %v327
    %377 = vmatprep.subr.mxu0 0.0
    %378 = vmatpush2.msra.mxu0 0.0
    %379 = vmatprep.subr.mxu0 0.0
    %380 = vmatpush2.msra.mxu0 0.0
    %381 = vmatprep.subr.mxu0 0.0
    %382 = vmatpush2.msra.mxu0 0.0
    %383 = vmatprep.subr.mxu0 0.0
    %384 = vmatpush2.msra.mxu0 0.0
    %385 = vmatprep.subr.mxu0 0.0
    %386 = vmatpush2.msra.mxu0 0.0
    %387 = vmatprep.subr.mxu0 0.0
    %388 = vmatpush2.msra.mxu0 0.0
    %389 = vmatprep.subr.mxu0 0.0
    %390 = vmatpush2.msra.mxu0 0.0
    %391 = vmatprep.subr.mxu0 0.0
    %392 = vmatpush2.msra.mxu0 0.0
    %393 = vmatprep.subr.mxu0 0.0
    %394 = vmatpush2.msra.mxu0 0.0
    %395 = vmatprep.subr.mxu0 0.0
    %396 = vmatpush2.msra.mxu0 0.0
    %397 = vmatprep.subr.mxu0 0.0
    %398 = vmatpush2.msra.mxu0 0.0
    %399 = vmatprep.subr.mxu0 0.0
    %400 = vmatpush2.msra.mxu0 0.0
    %401 = vmatprep.subr.mxu0 0.0
    %402 = vmatpush2.msra.mxu0 0.0
    %403 = vmatprep.subr.mxu0 0.0
    %404 = vmatpush2.msra.mxu0 0.0
    %405 = vmatprep.subr.mxu0 0.0
    %406 = vmatpush2.msra.mxu0 0.0
    %407 = vmatprep.subr.mxu0 0.0
    %408 = vmatpush2.msra.mxu0 0.0
    %409 = vmatprep.mubr.f32.mxu0 0.0
    %410 = vmatmul.mubr.f32.gmra.mxu0 %v326
    %v411 = vpop.f32.mrf.mxu0
    %v412 = vadd.f32 0.0, %v411
    %v413 = vpop.f32.mrf.mxu0
    %414 = vdwg.mxu0
    %v415 = vrot.slane %v412, 4
    %v416 = vadd.f32 %v412, %v415
    %v417 = vrot.slane %v416, 2
    %v418 = vadd.f32 %v416, %v417
    %v419 = vrot.slane %v418, 1
    %v420 = vadd.f32 %v418, %v419
    %v421 = vmul.f32 %v420, %v172
    %v422 = vsub.f32 %v412, %v421
    %v423 = vmul.f32 %v422, %v422
    %v424 = vrot.slane %v423, 4
    %v425 = vadd.f32 %v423, %v424
    %v426 = vrot.slane %v425, 2
    %v427 = vadd.f32 %v425, %v426
    %v428 = vrot.slane %v427, 1
    %v429 = vadd.f32 %v427, %v428
    %v430 = vmul.f32 %v429, %v172
    %v431 = vadd.f32 %v430, 1e-05
    %v432 = vrsqrt.pop %v431
    %v433 = vmul.f32 %v343, %v432
    %v434 = vmul.f32 %v421, %v433
    %v435 = vsub.f32 %v344, %v434
    %v437 = vlaneseq
    %v438 = vshrl.u32 %v437, 7
    %v439 = vsub.s32 0, %v438
    %v440 = vrot.slane %v433, %v439
    %v442 = vmul.f32 %v412, %v440
    %v444 = vlaneseq
    %v445 = vshrl.u32 %v444, 7
    %v446 = vsub.s32 0, %v445
    %v447 = vrot.slane %v435, %v446
    %v449 = vadd.f32 %v442, %v447
    %v450 = vmax.f32 %v449, 0.0
    %451 = vst [vmem:[#allocation8] sm:$0xff] %v450
    // Predicated region
    $region54: #{forward.1} parent=1 // pred_check
      _
    $region55: #{forward.1} parent=1 // pred_check_branch
      %453 = sbr.rel (0) target = $region57
    $region56: #{forward.1} parent=1 // pred_region
      %s455 = ssub.s32 128, 128
      %456 = vsyncadd [#allocation4], %s455
      %s458 = sshll.u32 [#allocation8], 4
      %s459 = int_to_ptr.vmem [resolvable:$true] %s458
      %461 = dma.vmem_to_hbm [thread:$0]  %s459, 128, %s10, [#allocation4]
    $region57: #{forward.1} parent=1 // pred_fallthru
      _
    // Predicated region
    $region58: #{forward.1} parent=1 // pred_check
      _
    $region59: #{forward.1} parent=1 // pred_check_branch
      %463 = sbr.rel (0) target = $region61
    $region60: #{forward.1} parent=1 // pred_region
      %464 = dma.done [#allocation4], 128
    $region61: #{forward.1} parent=1 // pred_fallthru
      _
    %465 = vsyncpa [#allocation3], 1
    %466 = vsyncpa [#allocation6], 1
    %467 = vsyncpa [#allocation4], 1

</llo_original>
